<compile_context>
chip_gen: v7x
topology: tpu7x:2x2x1
jax: 0.10.0
libtpu: 0.0.40
codegen_flags: <defaults>
</compile_context>

<pallas_src>
import jax
import jax.numpy as jnp
from jax.experimental import pallas as pl
from jax.experimental.pallas import tpu as pltpu


def _round_down(x, m):
    return (x // m) * m


def _round_up(x, m):
    return ((x + m - 1) // m) * m


def _key_proj_kernel(x_ref, w_ref, b_ref, o_ref):
    # x_ref: (C, tl), w_ref: (tk, C), b_ref: (tk, 1), o_ref: (tk, tl)
    acc = jnp.dot(w_ref[...], x_ref[...], preferred_element_type=jnp.float32)
    o_ref[...] = (acc + b_ref[...].astype(jnp.float32)).astype(o_ref.dtype)


def _key_proj_kernel_batched(x_ref, w_ref, b_ref, o_ref):
    # x_ref: (bn, C, L), w_ref: (K, C), b_ref: (K, 1), o_ref: (bn, K, L)
    acc = jnp.einsum(
        "kc,bcl->bkl", w_ref[...], x_ref[...], preferred_element_type=jnp.float32
    )
    o_ref[...] = (acc + b_ref[...].astype(jnp.float32)[None]).astype(o_ref.dtype)


def _vmem_budget():
    """Generation-aware VMEM budget with headroom for Mosaic internals."""
    try:
        cap = int(pltpu.get_tpu_info().vmem_capacity_bytes)
    except Exception:
        cap = 128 << 20  # v5e/v6e default physical VMEM
    # 75% of physical, and always leave >= 16 MiB headroom (v7x: 64 MiB -> 48 MiB).
    return max(16 << 20, min(int(cap * 0.75), cap - (16 << 20)))


def key_projector_forward(x, weight, bias, *, tl_max=2048, out_dtype=None):
    """Equivalent of nn.Conv1d(input_dim, key_dim, kernel_size=1).

    x:      (N, input_dim, L)    -- PyTorch NCL layout, kept as-is
    weight: (key_dim, input_dim) -- kernel_size=1 axis squeezed
    bias:   (key_dim,)
    returns (N, key_dim, L), dtype = out_dtype or x.dtype
    """
    N, C, L = x.shape
    K = weight.shape[0]
    out_dtype = jnp.dtype(out_dtype) if out_dtype is not None else jnp.dtype(x.dtype)

    x_it = jnp.dtype(x.dtype).itemsize
    w_it = jnp.dtype(weight.dtype).itemsize
    b_it = jnp.dtype(bias.dtype).itemsize
    o_it = out_dtype.itemsize

    budget = _vmem_budget()
    b2 = bias.reshape(K, 1)

    cost = pl.CostEstimate(
        flops=2 * N * K * C * L,
        transcendentals=0,
        bytes_accessed=N * C * L * x_it + K * C * w_it + K * b_it + N * K * L * o_it,
    )

    # ---------------- small-L path (L < 128): batched blocks ----------------
    if L < 128:
        # Output lane dim < 128 -> masked partial stores are unavoidable; block
        # several batch items per grid step to amortize per-step overhead.
        cap = max(1, 512 // max(L, 1))
        bn = 1
        for d in range(min(N, cap), 0, -1):
            if N % d == 0:  # exact divisor: no masked batch blocks needed
                bn = d
                break
        grid = (N // bn,)
        vmem_need = 2 * (bn * C * L * x_it + bn * K * L * o_it
                         + K * C * w_it + K * b_it)
        vmem_limit = int(min(budget, max(2 * vmem_need, 32 << 20)))
        return pl.pallas_call(
            _key_proj_kernel_batched,
            out_shape=jax.ShapeDtypeStruct((N, K, L), out_dtype),
            grid=grid,
            in_specs=[
                pl.BlockSpec((bn, C, L), lambda n: (n, 0, 0)),
                pl.BlockSpec((K, C), lambda n: (0, 0)),   # resident weight
                pl.BlockSpec((K, 1), lambda n: (0, 0)),   # resident bias
            ],
            out_specs=pl.BlockSpec((bn, K, L), lambda n: (n, 0, 0)),
            compiler_params=pltpu.CompilerParams(
                dimension_semantics=("parallel",),
                vmem_limit_bytes=vmem_limit,
            ),
            cost_estimate=cost,
        )(x, weight, b2)

    # ---------------- main path (L >= 128) ----------------
    # Weight residency guard (mainly for v7x 64 MiB VMEM): tile K only if the
    # resident weight would eat > ~25% of the budget. C stays full.
    w_budget = budget // 4
    tk = K
    if 2 * K * C * w_it > w_budget and K > 256:
        tk = min(K, max(256, _round_down(w_budget // (2 * C * w_it), 256)))
    kt = pl.cdiv(K, tk)

    # Lane tile from the VMEM budget: double-buffered x + out columns plus the
    # resident (double-buffered) weight/bias.
    fixed = 2 * (tk * C * w_it + tk * b_it)
    per_lane = 2 * (C * x_it + tk * o_it)
    tl_cap = _round_down(
        max(128, min(tl_max, (budget - fixed) // max(per_lane, 1))), 128
    )
    tl = L if L <= tl_cap else tl_cap

    # v7x megacore: prefer an even number of L tiles when it is the only
    # parallel dimension with >1 potential blocks (near-neutral on v5e/v6e).
    n_l = pl.cdiv(L, tl)
    if N == 1 and kt == 1 and (n_l % 2 == 1) and L > 128:
        tl = max(128, _round_up(pl.cdiv(L, n_l + 1), 128))
        n_l = pl.cdiv(L, tl)

    grid = (N, kt, n_l)
    vmem_need = fixed + per_lane * tl
    vmem_limit = int(min(budget, max(2 * vmem_need, 32 << 20)))

    return pl.pallas_call(
        _key_proj_kernel,
        out_shape=jax.ShapeDtypeStruct((N, K, L), out_dtype),
        grid=grid,
        in_specs=[
            # Activation tile: batch squeezed, full C (contraction invariant),
            # lane tile of L.
            pl.BlockSpec((None, C, tl), lambda n, k, l: (n, 0, l)),
            # Weight tile: resident across l (and across the whole grid if kt==1).
            pl.BlockSpec((tk, C), lambda n, k, l: (k, 0)),
            pl.BlockSpec((tk, 1), lambda n, k, l: (k, 0)),
        ],
        out_specs=pl.BlockSpec((None, tk, tl), lambda n, k, l: (n, k, l)),
        compiler_params=pltpu.CompilerParams(
            dimension_semantics=("parallel", "parallel", "parallel"),
            vmem_limit_bytes=vmem_limit,
        ),
        cost_estimate=cost,
    )(x, weight, b2)


def orthogonal_init(key, rows, cols, dtype=jnp.float32):
    """Deterministic orthogonal init matching nn.init.orthogonal_ semantics."""
    a = jax.random.normal(key, (rows, cols), dtype=jnp.float32)
    transposed = rows < cols
    if transposed:
        a = a.T
    q, r = jnp.linalg.qr(a)
    d = jnp.diagonal(r)
    q = q * jnp.where(d == 0, 1.0, jnp.sign(d))[None, :]  # sign-or-one guard
    if transposed:
        q = q.T
    return q.astype(dtype)


if __name__ == "__main__":
    # Conv1d expects (N, input_dim, L).
    batch, input_dim, key_dim, length = 2, 32, 16, 16

    root = jax.random.PRNGKey(0)
    k_x, k_w, k_x2, k_x3 = jax.random.split(root, 4)

    # Parameters (mirror __init__): orthogonal weight, zero bias.
    weight = orthogonal_init(k_w, key_dim, input_dim)  # (key_dim, input_dim)
    bias = jnp.zeros((key_dim,), dtype=jnp.float32)

    # --- Test 1: small L (< 128) exercises the batched small-L path. ---
    x = jax.random.normal(k_x, (batch, input_dim, length), dtype=jnp.float32)
    out = jax.block_until_ready(key_projector_forward(x, weight, bias))
    ref = jnp.einsum("kc,ncl->nkl", weight, x) + bias[None, :, None]
    assert out.shape == (batch, key_dim, length)
    assert jnp.allclose(out, ref, atol=1e-5, rtol=1e-5)

    # --- Test 2: L not a multiple of 128 with tiling -> masked partial tile. ---
    length2 = 300
    x2 = jax.random.normal(k_x2, (batch, input_dim, length2), dtype=jnp.float32)
    out2 = jax.block_until_ready(
        key_projector_forward(x2, weight, bias, tl_max=256)
    )
    ref2 = jnp.einsum("kc,ncl->nkl", weight, x2) + bias[None, :, None]
    assert out2.shape == (batch, key_dim, length2)
    assert jnp.allclose(out2, ref2, atol=1e-5, rtol=1e-5)

    # --- Test 3: bf16 end-to-end (f32 MXU accumulation kept in-kernel). ---
    length3 = 160
    x3 = jax.random.normal(k_x3, (batch, input_dim, length3), dtype=jnp.float32)
    x3_bf = x3.astype(jnp.bfloat16)
    w_bf = weight.astype(jnp.bfloat16)
    b_bf = bias.astype(jnp.bfloat16)
    out3 = jax.block_until_ready(key_projector_forward(x3_bf, w_bf, b_bf))
    ref3 = (
        jnp.einsum(
            "kc,ncl->nkl", w_bf.astype(jnp.float32), x3_bf.astype(jnp.float32)
        )
        + b_bf.astype(jnp.float32)[None, :, None]
    )
    assert out3.shape == (batch, key_dim, length3)
    assert out3.dtype == jnp.bfloat16
    assert jnp.allclose(out3.astype(jnp.float32), ref3, atol=3e-2, rtol=3e-2)

    print("KERNEL_OK")
</pallas_src>

<mosaic_0001>
module attributes {stable_mosaic.version = 11 : i64} {
  func.func @_key_proj_kernel_batched(%arg0: i32, %arg1: memref<2x32x16xf32, #tpu.memory_space<vmem>>, %arg2: memref<16x32xf32, #tpu.memory_space<vmem>>, %arg3: memref<16x1xf32, #tpu.memory_space<vmem>>, %arg4: memref<2x16x16xf32, #tpu.memory_space<vmem>>) attributes {dimension_semantics = [#tpu.dimension_semantics<parallel>], iteration_bounds = array<i64: 1>, scalar_prefetch = 0 : i64, scratch_operands = 0 : i64, tpu.core_type = #tpu.core_type<tc>, window_params = [{transform_indices = @transform_0, window_bounds = array<i64: 2, 32, 16>}, {pipeline_mode = #tpu.pipeline_mode<synchronous>, transform_indices = @transform_1, window_bounds = array<i64: 16, 32>}, {pipeline_mode = #tpu.pipeline_mode<synchronous>, transform_indices = @transform_2, window_bounds = array<i64: 16, 1>}, {transform_indices = @transform_3, window_bounds = array<i64: 2, 16, 16>}]} {
    %c0 = arith.constant 0 : index
    %c0_0 = arith.constant 0 : index
    %0 = vector.load %arg2[%c0, %c0_0] : memref<16x32xf32, #tpu.memory_space<vmem>>, vector<16x32xf32>
    %c0_1 = arith.constant 0 : index
    %c0_2 = arith.constant 0 : index
    %c0_3 = arith.constant 0 : index
    %1 = vector.load %arg1[%c0_1, %c0_2, %c0_3] : memref<2x32x16xf32, #tpu.memory_space<vmem>>, vector<2x32x16xf32>
    "tpu.trace_start"() <{level = 10 : i32, message = "kc,bcl->bkl"}> : () -> ()
    %cst = arith.constant dense<0.000000e+00> : vector<2x16x16xf32>
    %2 = tpu.matmul %1, %0, %cst {dimension_numbers = #tpu.dot_dimension_numbers<[1], [1], [0, 2], [0], [0, 0, 0, 2, 1, 0], [], []>} : vector<2x32x16xf32>, vector<16x32xf32>, vector<2x16x16xf32> -> vector<2x16x16xf32>
    %3 = tpu.transpose %2, [0, 2, 1] : vector<2x16x16xf32> -> vector<2x16x16xf32>
    "tpu.trace_stop"() : () -> ()
    %c0_4 = arith.constant 0 : index
    %c0_5 = arith.constant 0 : index
    %4 = vector.load %arg3[%c0_4, %c0_5] : memref<16x1xf32, #tpu.memory_space<vmem>>, vector<16x1xf32>
    %5 = vector.shape_cast %4 : vector<16x1xf32> to vector<1x16x1xf32>
    %6 = vector.broadcast %5 : vector<1x16x1xf32> to vector<2x16x16xf32>
    %7 = arith.addf %3, %6 : vector<2x16x16xf32>
    %c0_6 = arith.constant 0 : index
    %c0_7 = arith.constant 0 : index
    %c0_8 = arith.constant 0 : index
    %8 = vector.load %arg4[%c0_6, %c0_7, %c0_8] : memref<2x16x16xf32, #tpu.memory_space<vmem>>, vector<2x16x16xf32>
    tpu.vector_store %arg4[%c0_6, %c0_7, %c0_8], %7 {strides = array<i32>} : memref<2x16x16xf32, #tpu.memory_space<vmem>>, vector<2x16x16xf32>,
    return
  }
  func.func @transform_0(%arg0: i32) -> (i32, i32, i32) {
    %c0_i32 = arith.constant 0 : i32
    %c0_i32_0 = arith.constant 0 : i32
    %c0_i32_1 = arith.constant 0 : i32
    return %arg0, %c0_i32, %c0_i32_0 : i32, i32, i32
  }
  func.func @transform_1(%arg0: i32) -> (i32, i32) {
    %c0_i32 = arith.constant 0 : i32
    %c0_i32_0 = arith.constant 0 : i32
    %c0_i32_1 = arith.constant 0 : i32
    return %c0_i32, %c0_i32_0 : i32, i32
  }
  func.func @transform_2(%arg0: i32) -> (i32, i32) {
    %c0_i32 = arith.constant 0 : i32
    %c0_i32_0 = arith.constant 0 : i32
    %c0_i32_1 = arith.constant 0 : i32
    return %c0_i32, %c0_i32_0 : i32, i32
  }
  func.func @transform_3(%arg0: i32) -> (i32, i32, i32) {
    %c0_i32 = arith.constant 0 : i32
    %c0_i32_0 = arith.constant 0 : i32
    %c0_i32_1 = arith.constant 0 : i32
    return %arg0, %c0_i32, %c0_i32_0 : i32, i32, i32
  }
}

</mosaic_0001>

<llo_original>
// kernel: tpu_custom_call.1
$region0: #{tpu_custom_call.1}
  #allocation0 [shape = 'u32[]', space=smem, size = 0x4, offset = 0x4, fixed_abs, tag = 'smem constant byte address 0x4 - core index']
  #allocation1 [shape = 'u32[144,128]{1,0:T(1,128)}', space=vmem, size = 0x12000, scoped, tag = 'internal scratch']
  %s0 = inlined_call_operand.vmem [shape: f32[2,32,16], index: 0, kind: input, shape index: {}]
  %s1 = inlined_call_operand.vmem [shape: f32[16,32], index: 1, kind: input, shape index: {}]
  %s2 = inlined_call_operand.vmem [shape: f32[16,1], index: 2, kind: input, shape index: {}]
  %s3 = inlined_call_operand.hbm [shape: f32[2,16,16], index: 3, kind: output, shape index: {}]
  %s4 = sld [smem:[#allocation0]]
  $region22: #{tpu_custom_call.1} parent=0
    _
  %s6 = ssub.s32 1, %s4
  %s7 = scalar_select 0, %s6, %s4
  $region1: #{tpu_custom_call.1} parent=0
    #allocation2 [shape = 'u8[16384]{0}', space=vmem, size = 0x4000, scoped, tag = 'output window, operand 0, single buffered']
    #allocation3 [shape = 's32[1]{0}', space=sflag, size = 0x4, scoped, tag = 'scoped memory for tpu_custom_call.1']
    %8 = vsyncpa [#allocation3], 0
    // Predicated region
    $region2: #{tpu_custom_call.1} parent=1 // pred_check
      _
    $region3: #{tpu_custom_call.1} parent=1 // pred_check_branch
      %10 = sbr.rel (0) target = $region5
    $region4: #{tpu_custom_call.1} parent=1 // pred_region
      _
    $region5: #{tpu_custom_call.1} parent=1 // pred_fallthru
      _
    // Predicated region
    $region6: #{tpu_custom_call.1} parent=1 // pred_check
      _
    $region7: #{tpu_custom_call.1} parent=1 // pred_check_branch
      %12 = sbr.rel (0) target = $region9
    $region8: #{tpu_custom_call.1} parent=1 // pred_region
      _
    $region9: #{tpu_custom_call.1} parent=1 // pred_fallthru
      _
    // Predicated region
    $region10: #{tpu_custom_call.1} parent=1 // pred_check
      _
    $region11: #{tpu_custom_call.1} parent=1 // pred_check_branch
      %14 = sbr.rel (0) target = $region13
    $region12: #{tpu_custom_call.1} parent=1 // pred_region
      _
    $region13: #{tpu_custom_call.1} parent=1 // pred_fallthru
      _
    %v15 = vld [vmem:[%s1] sm:$0xff]
    %v16 = vld [vmem:[%s1 + $0x8] sm:$0xff]
    %v17 = vld [vmem:[%s0] sm:$0xff]
    %v18 = vld [vmem:[%s0 + $0x8] sm:$0xff]
    %v19 = vld [vmem:[%s0 + $0x10] sm:$0xff]
    %v20 = vld [vmem:[%s0 + $0x18] sm:$0xff]
    %v21 = vld [vmem:[%s0 + $0x20] sm:$0xff]
    %v22 = vld [vmem:[%s0 + $0x28] sm:$0xff]
    %v23 = vld [vmem:[%s0 + $0x30] sm:$0xff]
    %v24 = vld [vmem:[%s0 + $0x38] sm:$0xff]
    %25 = vxpose.xlu0.b32.start [1/16] %v17, 128
    %26 = vxpose.xlu0.b32.cont [2/16] %v18, 128
    %27 = vxpose.xlu0.b32.cont [3/16] %v19, 128
    %28 = vxpose.xlu0.b32.cont [4/16] %v20, 128
    %29 = vxpose.xlu0.b32.cont [5/16] 0.0, 128
    %30 = vxpose.xlu0.b32.cont [6/16] 0.0, 128
    %31 = vxpose.xlu0.b32.cont [7/16] 0.0, 128
    %32 = vxpose.xlu0.b32.cont [8/16] 0.0, 128
    %33 = vxpose.xlu0.b32.cont [9/16] 0.0, 128
    %34 = vxpose.xlu0.b32.cont [10/16] 0.0, 128
    %35 = vxpose.xlu0.b32.cont [11/16] 0.0, 128
    %36 = vxpose.xlu0.b32.cont [12/16] 0.0, 128
    %37 = vxpose.xlu0.b32.cont [13/16] 0.0, 128
    %38 = vxpose.xlu0.b32.cont [14/16] 0.0, 128
    %39 = vxpose.xlu0.b32.cont [15/16] 0.0, 128
    %40 = vxpose.xlu0.b32.end [16/16] 0.0, 128
    %v41 = vpop.trf.xlu0
    %v42 = vpop.trf.xlu0
    %v43 = vpop.trf.xlu0
    %v44 = vpop.trf.xlu0
    %v45 = vpop.trf.xlu0
    %v46 = vpop.trf.xlu0
    %v47 = vpop.trf.xlu0
    %v48 = vpop.trf.xlu0
    %v49 = vpop.trf.xlu0
    %v50 = vpop.trf.xlu0
    %v51 = vpop.trf.xlu0
    %v52 = vpop.trf.xlu0
    %v53 = vpop.trf.xlu0
    %v54 = vpop.trf.xlu0
    %v55 = vpop.trf.xlu0
    %v56 = vpop.trf.xlu0
    %57 = vxpose.xlu0.b32.start [1/16] %v21, 128
    %58 = vxpose.xlu0.b32.cont [2/16] %v22, 128
    %59 = vxpose.xlu0.b32.cont [3/16] %v23, 128
    %60 = vxpose.xlu0.b32.cont [4/16] %v24, 128
    %61 = vxpose.xlu0.b32.cont [5/16] 0.0, 128
    %62 = vxpose.xlu0.b32.cont [6/16] 0.0, 128
    %63 = vxpose.xlu0.b32.cont [7/16] 0.0, 128
    %64 = vxpose.xlu0.b32.cont [8/16] 0.0, 128
    %65 = vxpose.xlu0.b32.cont [9/16] 0.0, 128
    %66 = vxpose.xlu0.b32.cont [10/16] 0.0, 128
    %67 = vxpose.xlu0.b32.cont [11/16] 0.0, 128
    %68 = vxpose.xlu0.b32.cont [12/16] 0.0, 128
    %69 = vxpose.xlu0.b32.cont [13/16] 0.0, 128
    %70 = vxpose.xlu0.b32.cont [14/16] 0.0, 128
    %71 = vxpose.xlu0.b32.cont [15/16] 0.0, 128
    %72 = vxpose.xlu0.b32.end [16/16] 0.0, 128
    %v73 = vpop.trf.xlu0
    %v74 = vpop.trf.xlu0
    %v75 = vpop.trf.xlu0
    %v76 = vpop.trf.xlu0
    %v77 = vpop.trf.xlu0
    %v78 = vpop.trf.xlu0
    %v79 = vpop.trf.xlu0
    %v80 = vpop.trf.xlu0
    %v81 = vpop.trf.xlu0
    %v82 = vpop.trf.xlu0
    %v83 = vpop.trf.xlu0
    %v84 = vpop.trf.xlu0
    %v85 = vpop.trf.xlu0
    %v86 = vpop.trf.xlu0
    %v87 = vpop.trf.xlu0
    %v88 = vpop.trf.xlu0
    %vm89 = vcmask 261120
    %v91 = vsel %vm89, %v41, 0
    %v94 = vsel %vm89, %v42, 0
    %v97 = vsel %vm89, %v73, 0
    %v100 = vsel %vm89, %v74, 0
    %v103 = vsel %vm89, %v15, 0
    %v106 = vsel %vm89, %v16, 0
    %108 = vmatprep.subr.mxu0 0.0
    %109 = vmatpush1.xpose.msra.mxu0 %v103
    %110 = vmatprep.subr.mxu0 0.0
    %111 = vmatpush1.xpose.msra.mxu0 %v106
    %112 = vmatprep.subr.mxu0 0.0
    %113 = vmatpush1.xpose.msra.mxu0 0.0
    %114 = vmatprep.subr.mxu0 0.0
    %115 = vmatpush1.xpose.msra.mxu0 0.0
    %116 = vmatprep.subr.mxu0 0.0
    %117 = vmatpush1.xpose.msra.mxu0 0.0
    %118 = vmatprep.subr.mxu0 0.0
    %119 = vmatpush1.xpose.msra.mxu0 0.0
    %120 = vmatprep.subr.mxu0 0.0
    %121 = vmatpush1.xpose.msra.mxu0 0.0
    %122 = vmatprep.subr.mxu0 0.0
    %123 = vmatpush1.xpose.msra.mxu0 0.0
    %124 = vmatprep.subr.mxu0 0.0
    %125 = vmatpush1.xpose.msra.mxu0 0.0
    %126 = vmatprep.subr.mxu0 0.0
    %127 = vmatpush1.xpose.msra.mxu0 0.0
    %128 = vmatprep.subr.mxu0 0.0
    %129 = vmatpush1.xpose.msra.mxu0 0.0
    %130 = vmatprep.subr.mxu0 0.0
    %131 = vmatpush1.xpose.msra.mxu0 0.0
    %132 = vmatprep.subr.mxu0 0.0
    %133 = vmatpush1.xpose.msra.mxu0 0.0
    %134 = vmatprep.subr.mxu0 0.0
    %135 = vmatpush1.xpose.msra.mxu0 0.0
    %136 = vmatprep.subr.mxu0 0.0
    %137 = vmatpush1.xpose.msra.mxu0 0.0
    %138 = vmatprep.subr.mxu0 0.0
    %139 = vmatpush1.xpose.msra.mxu0 0.0
    %140 = vmatprep.subr.mxu0 0.0
    %141 = vmatpush1.xpose.msra.mxu0 0.0
    %142 = vmatprep.subr.mxu0 0.0
    %143 = vmatpush1.xpose.msra.mxu0 0.0
    %144 = vmatprep.subr.mxu0 0.0
    %145 = vmatpush1.xpose.msra.mxu0 0.0
    %146 = vmatprep.subr.mxu0 0.0
    %147 = vmatpush1.xpose.msra.mxu0 0.0
    %148 = vmatprep.subr.mxu0 0.0
    %149 = vmatpush1.xpose.msra.mxu0 0.0
    %150 = vmatprep.subr.mxu0 0.0
    %151 = vmatpush1.xpose.msra.mxu0 0.0
    %152 = vmatprep.subr.mxu0 0.0
    %153 = vmatpush1.xpose.msra.mxu0 0.0
    %154 = vmatprep.subr.mxu0 0.0
    %155 = vmatpush1.xpose.msra.mxu0 0.0
    %156 = vmatprep.subr.mxu0 0.0
    %157 = vmatpush1.xpose.msra.mxu0 0.0
    %158 = vmatprep.subr.mxu0 0.0
    %159 = vmatpush1.xpose.msra.mxu0 0.0
    %160 = vmatprep.subr.mxu0 0.0
    %161 = vmatpush1.xpose.msra.mxu0 0.0
    %162 = vmatprep.subr.mxu0 0.0
    %163 = vmatpush1.xpose.msra.mxu0 0.0
    %164 = vmatprep.subr.mxu0 0.0
    %165 = vmatpush1.xpose.msra.mxu0 0.0
    %166 = vmatprep.subr.mxu0 0.0
    %167 = vmatpush1.xpose.msra.mxu0 0.0
    %168 = vmatprep.subr.mxu0 0.0
    %169 = vmatpush1.xpose.msra.mxu0 0.0
    %170 = vmatprep.subr.mxu0 0.0
    %171 = vmatpush1.xpose.msra.mxu0 0.0
    %172 = vmatprep.mubr.f32.mxu0 0.0
    %173 = vmatmul.mubr.f32.gmra.mrb[0].mxu0 %v91
    %v174 = vpop.f32.mrb[0].mxu0
    %v175 = vadd.f32 0.0, %v174
    %v176 = vpop.f32.mrb[0].mxu0
    %177 = vmatprep.mubr.f32.mxu0 0.0
    %178 = vmatmul.mubr.f32.gmra.mrb[0].mxu0 %v94
    %v179 = vpop.f32.mrb[0].mxu0
    %v180 = vadd.f32 0.0, %v179
    %v181 = vpop.f32.mrb[0].mxu0
    %182 = vmatprep.mubr.f32.mxu0 0.0
    %183 = vmatmul.mubr.f32.gmra.mrb[0].mxu0 %v97
    %v184 = vpop.f32.mrb[0].mxu0
    %v185 = vadd.f32 0.0, %v184
    %v186 = vpop.f32.mrb[0].mxu0
    %187 = vmatprep.mubr.f32.mxu0 0.0
    %188 = vmatmul.mubr.f32.gmra.mrb[0].mxu0 %v100
    %v189 = vpop.f32.mrb[0].mxu0
    %v190 = vadd.f32 0.0, %v189
    %v191 = vpop.f32.mrb[0].mxu0
    %192 = vdwg.mxu0
    %193 = vxpose.xlu0.b32.start [1/16] %v175, 128
    %194 = vxpose.xlu0.b32.cont [2/16] %v180, 128
    %195 = vxpose.xlu0.b32.cont [3/16] 0.0, 128
    %196 = vxpose.xlu0.b32.cont [4/16] 0.0, 128
    %197 = vxpose.xlu0.b32.cont [5/16] 0.0, 128
    %198 = vxpose.xlu0.b32.cont [6/16] 0.0, 128
    %199 = vxpose.xlu0.b32.cont [7/16] 0.0, 128
    %200 = vxpose.xlu0.b32.cont [8/16] 0.0, 128
    %201 = vxpose.xlu0.b32.cont [9/16] 0.0, 128
    %202 = vxpose.xlu0.b32.cont [10/16] 0.0, 128
    %203 = vxpose.xlu0.b32.cont [11/16] 0.0, 128
    %204 = vxpose.xlu0.b32.cont [12/16] 0.0, 128
    %205 = vxpose.xlu0.b32.cont [13/16] 0.0, 128
    %206 = vxpose.xlu0.b32.cont [14/16] 0.0, 128
    %207 = vxpose.xlu0.b32.cont [15/16] 0.0, 128
    %208 = vxpose.xlu0.b32.end [16/16] 0.0, 128
    %v209 = vpop.trf.xlu0
    %v210 = vpop.trf.xlu0
    %v211 = vpop.trf.xlu0
    %v212 = vpop.trf.xlu0
    %v213 = vpop.trf.xlu0
    %v214 = vpop.trf.xlu0
    %v215 = vpop.trf.xlu0
    %v216 = vpop.trf.xlu0
    %v217 = vpop.trf.xlu0
    %v218 = vpop.trf.xlu0
    %v219 = vpop.trf.xlu0
    %v220 = vpop.trf.xlu0
    %v221 = vpop.trf.xlu0
    %v222 = vpop.trf.xlu0
    %v223 = vpop.trf.xlu0
    %v224 = vpop.trf.xlu0
    %225 = vxpose.xlu0.b32.start [1/16] %v185, 128
    %226 = vxpose.xlu0.b32.cont [2/16] %v190, 128
    %227 = vxpose.xlu0.b32.cont [3/16] 0.0, 128
    %228 = vxpose.xlu0.b32.cont [4/16] 0.0, 128
    %229 = vxpose.xlu0.b32.cont [5/16] 0.0, 128
    %230 = vxpose.xlu0.b32.cont [6/16] 0.0, 128
    %231 = vxpose.xlu0.b32.cont [7/16] 0.0, 128
    %232 = vxpose.xlu0.b32.cont [8/16] 0.0, 128
    %233 = vxpose.xlu0.b32.cont [9/16] 0.0, 128
    %234 = vxpose.xlu0.b32.cont [10/16] 0.0, 128
    %235 = vxpose.xlu0.b32.cont [11/16] 0.0, 128
    %236 = vxpose.xlu0.b32.cont [12/16] 0.0, 128
    %237 = vxpose.xlu0.b32.cont [13/16] 0.0, 128
    %238 = vxpose.xlu0.b32.cont [14/16] 0.0, 128
    %239 = vxpose.xlu0.b32.cont [15/16] 0.0, 128
    %240 = vxpose.xlu0.b32.end [16/16] 0.0, 128
    %v241 = vpop.trf.xlu0
    %v242 = vpop.trf.xlu0
    %v243 = vpop.trf.xlu0
    %v244 = vpop.trf.xlu0
    %v245 = vpop.trf.xlu0
    %v246 = vpop.trf.xlu0
    %v247 = vpop.trf.xlu0
    %v248 = vpop.trf.xlu0
    %v249 = vpop.trf.xlu0
    %v250 = vpop.trf.xlu0
    %v251 = vpop.trf.xlu0
    %v252 = vpop.trf.xlu0
    %v253 = vpop.trf.xlu0
    %v254 = vpop.trf.xlu0
    %v255 = vpop.trf.xlu0
    %v256 = vpop.trf.xlu0
    %v257 = vld [vmem:[%s2] sm:$0xff]
    %v258 = vld [vmem:[%s2 + $0x8] sm:$0xff]
    %260 = vset.pattern.permute.xlu0 0
    %261 = vperm.xlu0 %260, %v257
    %v262 = vpop.permute.xlu0 %261
    %265 = vset.pattern.permute.xlu0 0
    %266 = vperm.xlu0 %265, %v258
    %v267 = vpop.permute.xlu0 %266
    %v269 = vadd.f32 %v209, %v262
    %v270 = vadd.f32 %v210, %v267
    %v271 = vadd.f32 %v241, %v262
    %v272 = vadd.f32 %v242, %v267
    %vm273 = vcmask 130048
    %274 = vst.msk [vmem:[#allocation2] sm:$0xff] %vm273, %v269
    %275 = vst.msk [vmem:[#allocation2 + $0x8] sm:$0xff] %vm273, %v270
    %276 = vst.msk [vmem:[#allocation2 + $0x10] sm:$0xff] %vm273, %v271
    %277 = vst.msk [vmem:[#allocation2 + $0x18] sm:$0xff] %vm273, %v272
    // Predicated region
    $region14: #{tpu_custom_call.1} parent=1 // pred_check
      _
    $region15: #{tpu_custom_call.1} parent=1 // pred_check_branch
      %279 = sbr.rel (0) target = $region17
    $region16: #{tpu_custom_call.1} parent=1 // pred_region
      %s281 = ssub.s32 512, 512
      %282 = vsyncadd [#allocation3], %s281
      %s283 = sshll.u32 [#allocation2], 4
      %s284 = int_to_ptr.vmem [resolvable:$true] %s283
      %289 = dma.vmem_to_hbm [thread:$0]  %s284, 512, %s3, [#allocation3], 128, 128, 8
    $region17: #{tpu_custom_call.1} parent=1 // pred_fallthru
      _
    // Predicated region
    $region18: #{tpu_custom_call.1} parent=1 // pred_check
      _
    $region19: #{tpu_custom_call.1} parent=1 // pred_check_branch
      %291 = sbr.rel (0) target = $region21
    $region20: #{tpu_custom_call.1} parent=1 // pred_region
      %292 = dma.done [#allocation3], 512
    $region21: #{tpu_custom_call.1} parent=1 // pred_fallthru
      _
    %293 = vsyncpa [#allocation3], 1

</llo_original>
